<compile_context>
chip_gen: v7x
topology: tpu7x:2x2x1
jax: 0.10.0
libtpu: 0.0.40
codegen_flags: <defaults>
</compile_context>

<pallas_src>
import functools

import jax
import jax.numpy as jnp
from jax.experimental import pallas as pl
from jax.experimental.pallas import tpu as pltpu


def _identity_kernel(x_ref, o_ref):
    # Pure VMEM pass-through of one lane-dense tile.
    o_ref[...] = x_ref[...]


def _lane_dense_view(total: int, rows_hint: int, cols_hint: int):
    """Pick a (rows, cols) factorization whose last dim is a multiple of 128."""
    if total % 128 != 0:
        # Fall back to the natural (B*C, H*W) view; full-extent blocks are
        # exempt from the (8, 128) divisibility rule (stores may be masked).
        return rows_hint, cols_hint
    cols = 128
    while cols * 2 <= 2048 and total % (cols * 2) == 0 and total // (cols * 2) >= 8:
        cols *= 2
    return total // cols, cols


def _pick_tiles(rows: int, cols: int, itemsize: int):
    """Largest (tm, tc) tile that keeps 2 arrays x 2 buffers under ~8 MiB."""
    sub_unit = max(8, 32 // itemsize)          # 8 f32, 16 bf16, 32 int8
    tile_bytes = 2 * 1024 * 1024               # per buffer
    if cols % 128 == 0 and cols > 2048:
        tc = 2048                              # lane-dense, multiple of 128
    else:
        tc = cols                              # full extent (exempt from rule)
    max_tm = max(1, tile_bytes // (tc * itemsize))
    if rows <= max_tm:
        tm = rows                              # full extent
    else:
        tm = max(sub_unit, (max_tm // sub_unit) * sub_unit)
    return tm, tc


def _identity_stream(x2d: jax.Array) -> jax.Array:
    rows, cols = x2d.shape
    itemsize = jnp.dtype(x2d.dtype).itemsize
    tm, tc = _pick_tiles(rows, cols, itemsize)
    grid = (pl.cdiv(rows, tm), pl.cdiv(cols, tc))
    return pl.pallas_call(
        _identity_kernel,
        out_shape=jax.ShapeDtypeStruct((rows, cols), x2d.dtype),
        grid_spec=pl.GridSpec(
            grid=grid,
            in_specs=[pl.BlockSpec((tm, tc), lambda i, j: (i, j))],
            out_specs=pl.BlockSpec((tm, tc), lambda i, j: (i, j)),
        ),
        # Output HBM buffer aliases input 0 (same shape/dtype): no extra write
        # when the caller donates the activation buffer.
        input_output_aliases={0: 0},
        cost_estimate=pl.CostEstimate(
            flops=0,
            transcendentals=0,
            bytes_accessed=2 * rows * cols * itemsize,
        ),
        compiler_params=pltpu.CompilerParams(
            dimension_semantics=("parallel", "parallel"),
        ),
    )(x2d)


@functools.partial(jax.jit, donate_argnums=(0,))
def _core_forward_impl(inputs, behaviors, pupil_centers):
    B, C, H, W = inputs.shape
    rows, cols = _lane_dense_view(B * C * H * W, B * C, H * W)
    x2d = inputs.reshape(rows, cols)           # contiguous -> free bitcast
    out2d = _identity_stream(x2d)
    features = out2d.reshape(B, C, H, W)
    # The abstract base Core does not consume behaviors / pupil_centers.
    return features, behaviors, pupil_centers


def core_forward(
    inputs: jax.Array,         # (B, C, H, W)  NCHW, like the PyTorch module
    mouse_id: str,             # unused by the base class
    behaviors: jax.Array,      # (B, n_behaviors) -- pass-through
    pupil_centers: jax.Array,  # (B, 2)           -- pass-through
):
    del mouse_id  # base Core does not consume it
    return _core_forward_impl(inputs, behaviors, pupil_centers)


if __name__ == "__main__":
    key = jax.random.PRNGKey(0)
    k1, k2, k3 = jax.random.split(key, 3)

    # Small shapes consistent with the module's NCHW input convention.
    B, C, H, W = 2, 4, 16, 16
    inputs = jax.random.normal(k1, (B, C, H, W), dtype=jnp.float32)
    behaviors = jax.random.normal(k2, (B, 3), dtype=jnp.float32)
    pupil_centers = jax.random.normal(k3, (B, 2), dtype=jnp.float32)

    # `inputs` is donated (its device buffer is aliased to the output), so
    # snapshot host copies for verification before the call.
    expected = jax.device_get(inputs)
    behaviors_ref = jax.device_get(behaviors)
    pupil_ref = jax.device_get(pupil_centers)

    feats, beh_out, pup_out = core_forward(
        inputs, mouse_id="A", behaviors=behaviors, pupil_centers=pupil_centers
    )
    jax.block_until_ready(feats)

    # Sanity: base-class identity contract preserved exactly.
    assert feats.shape == (B, C, H, W)
    assert bool(jnp.allclose(jax.device_get(feats), expected))
    assert bool(jnp.allclose(jax.device_get(beh_out), behaviors_ref))
    assert bool(jnp.allclose(jax.device_get(pup_out), pupil_ref))

    print("KERNEL_OK")
</pallas_src>

<mosaic_0001>
module attributes {stable_mosaic.version = 11 : i64} {
  func.func @_identity_kernel(%arg0: i32, %arg1: i32, %arg2: memref<8x256xf32, #tpu.memory_space<vmem>>, %arg3: memref<8x256xf32, #tpu.memory_space<vmem>>) attributes {dimension_semantics = [#tpu.dimension_semantics<parallel>, #tpu.dimension_semantics<parallel>], iteration_bounds = array<i64: 1, 1>, scalar_prefetch = 0 : i64, scratch_operands = 0 : i64, tpu.core_type = #tpu.core_type<tc>, window_params = [{transform_indices = @transform_0, window_bounds = array<i64: 8, 256>}, {transform_indices = @transform_1, window_bounds = array<i64: 8, 256>}]} {
    %c0 = arith.constant 0 : index
    %c0_0 = arith.constant 0 : index
    %0 = vector.load %arg2[%c0, %c0_0] : memref<8x256xf32, #tpu.memory_space<vmem>>, vector<8x256xf32>
    %c0_1 = arith.constant 0 : index
    %c0_2 = arith.constant 0 : index
    %1 = vector.load %arg3[%c0_1, %c0_2] : memref<8x256xf32, #tpu.memory_space<vmem>>, vector<8x256xf32>
    tpu.vector_store %arg3[%c0_1, %c0_2], %0 {strides = array<i32>} : memref<8x256xf32, #tpu.memory_space<vmem>>, vector<8x256xf32>,
    return
  }
  func.func @transform_0(%arg0: i32, %arg1: i32) -> (i32, i32) {
    %c0_i32 = arith.constant 0 : i32
    return %arg0, %arg1 : i32, i32
  }
  func.func @transform_1(%arg0: i32, %arg1: i32) -> (i32, i32) {
    %c0_i32 = arith.constant 0 : i32
    return %arg0, %arg1 : i32, i32
  }
}

</mosaic_0001>

<llo_original>
// kernel: _core_forward_impl.1
$region0: #{_core_forward_impl.1}
  #allocation0 [shape = 'u32[]', space=smem, size = 0x4, offset = 0x4, fixed_abs, tag = 'smem constant byte address 0x4 - core index']
  #allocation1 [shape = 'u32[144,128]{1,0:T(1,128)}', space=vmem, size = 0x12000, scoped, tag = 'internal scratch']
  %s0 = inlined_call_operand.vmem [shape: f32[8,256], index: 0, kind: input, shape index: {}, may-alias: {0,1}]
  %s1 = inlined_call_operand.vmem [shape: f32[8,256], index: 1, kind: output, shape index: {}, may-alias: {0,1}]
  %s2 = sld [smem:[#allocation0]]
  $region14: #{_core_forward_impl.1} parent=0
    _
  %s4 = ssub.s32 1, %s2
  %s5 = scalar_select 0, %s4, %s2
  // Predicated region
  $region2: #{_core_forward_impl.1} parent=0 // pred_check
    _
  $region3: #{_core_forward_impl.1} parent=0 // pred_check_branch
    %7 = sbr.rel (0) target = $region5
  $region4: #{_core_forward_impl.1} parent=0 // pred_region
    _
  $region5: #{_core_forward_impl.1} parent=0 // pred_fallthru
    _
  %v8 = vld [vmem:[%s0] sm:$0xff]
  %v9 = vld [vmem:[%s0 + $0x8] sm:$0xff]
  %10 = vst [vmem:[%s1] sm:$0xff] %v8
  %11 = vst [vmem:[%s1 + $0x8] sm:$0xff] %v9
  // Predicated region
  $region6: #{_core_forward_impl.1} parent=0 // pred_check
    _
  $region7: #{_core_forward_impl.1} parent=0 // pred_check_branch
    %13 = sbr.rel (0) target = $region9
  $region8: #{_core_forward_impl.1} parent=0 // pred_region
    _
  $region9: #{_core_forward_impl.1} parent=0 // pred_fallthru
    _
  // Predicated region
  $region10: #{_core_forward_impl.1} parent=0 // pred_check
    _
  $region11: #{_core_forward_impl.1} parent=0 // pred_check_branch
    %15 = sbr.rel (0) target = $region13
  $region12: #{_core_forward_impl.1} parent=0 // pred_region
    _
  $region13: #{_core_forward_impl.1} parent=0 // pred_fallthru
    _

</llo_original>
